<compile_context>
chip_gen: v6e
topology: v6e:2x2x1
jax: 0.10.0
libtpu: 0.0.40
codegen_flags: <defaults>
</compile_context>

<pallas_src>
import jax
import jax.numpy as jnp
from jax.experimental import pallas as pl
from jax.experimental.pallas import tpu as pltpu


_MXU_MIN_C = 16                 # channel count where the MXU matmul path takes over
_TARGET_TILE_BYTES = 4 << 20    # ~4 MiB tiles amortize per-grid-step overhead
_MIN_TILE_BYTES = 1 << 20       # don't shrink below ~1 MiB just to add steps


def _cdiv(a, b):
    return -(-a // b)


def _round_up(a, b):
    return _cdiv(a, b) * b


# ----------------------------------------------------------------------------
# Kernels
# ----------------------------------------------------------------------------
def _channel_mix_vpu_kernel(w_ref, b_ref, x_ref, o_ref):
    """Small-C path (C < 16): dense broadcast FMAs on the VPU.

    w_ref: (C, C) f32 VMEM   b_ref: (C, 1) f32 VMEM
    x_ref/o_ref: (TB, C, TS) VMEM tiles (TS lane-dense).

    The input tile is loaded (and cast) once, each channel slice is read once
    (C reads, not C^2), and a single dense full-tile store is emitted.
    """
    C = o_ref.shape[1]
    x = x_ref[...].astype(jnp.float32)                    # (TB, C, TS)
    w = w_ref[...]                                        # (C, C) f32
    acc = x[:, 0:1, :] * w[:, 0:1][None, :, :]            # (TB, C, TS)
    for ci in range(1, C):
        acc = acc + x[:, ci:ci + 1, :] * w[:, ci:ci + 1][None, :, :]
    o_ref[...] = (acc + b_ref[...][None, :, :]).astype(o_ref.dtype)


def _make_mxu_kernel(tb):
    """Large-C path (C >= 16): one (C,C)@(C,TS) MXU matmul per (b,h) slab."""
    def kernel(w_ref, b_ref, x_ref, o_ref):
        w = w_ref[...]                                    # (C, C), native dtype
        b = b_ref[...]                                    # (C, 1) f32
        for t in range(tb):                               # static unroll, tb <= 8
            y = jnp.dot(w, x_ref[t], preferred_element_type=jnp.float32)
            o_ref[t] = (y + b).astype(o_ref.dtype)        # dense (C, TS) store
    return kernel


# ----------------------------------------------------------------------------
# Tiling and host-side wrapper around pallas_call
# ----------------------------------------------------------------------------
def _choose_tiles(BH, C, S, itemsize,
                  target_bytes=_TARGET_TILE_BYTES, min_bytes=_MIN_TILE_BYTES):
    """Pick (TB, TS): (b,h)-slabs per step x spatial lane tile."""
    if S % 128 == 0:
        lanes = max(128, ((target_bytes // (C * itemsize)) // 128) * 128)
        TS = min(S, lanes)
    else:
        TS = S  # last block dim must be a multiple of 128 or the full extent
    slab = C * TS * itemsize
    TB = 1 if slab >= target_bytes else int(min(BH, max(1, target_bytes // slab)))

    def n_steps(tb, ts):
        return _cdiv(BH, tb) * _cdiv(S, ts)

    # Prefer >= 4 grid steps (2 per v7x TensorCore, pipeline depth >= 2) as
    # long as tiles stay >= ~1 MiB.
    while n_steps(TB, TS) < 4:
        if TB > 1 and (TB // 2) * slab >= min_bytes:
            TB //= 2
        elif TS % 256 == 0 and C * (TS // 2) * itemsize >= min_bytes:
            TS //= 2
            slab = C * TS * itemsize
        else:
            break
    return TB, TS


def channel_mix_pallas(x_flat, w, b):
    """out[n, co, s] = sum_ci W[co, ci] * x[n, ci, s] + bias[co].

    x_flat: (BH, C, S); w: (C, C); b: (C,).
    """
    BH, C, S = x_flat.shape
    dtype = x_flat.dtype
    itemsize = jnp.dtype(dtype).itemsize

    # Only if S is not lane-aligned AND a single full-S slab would be too big
    # for VMEM double-buffering do we pad once (extra HBM pass, but compiles
    # on all generations).  Common case (S % 128 == 0): no pad, no slice.
    S_out = S
    if S % 128 != 0 and C * S * itemsize > (8 << 20):
        S = _round_up(S, 128)
        x_flat = jnp.pad(x_flat, ((0, 0), (0, 0), (0, S - S_out)))

    use_mxu = C >= _MXU_MIN_C
    TB, TS = _choose_tiles(BH, C, S, itemsize)
    if use_mxu:
        TB = max(1, min(TB, 8))       # bounds the static per-slab matmul unroll
    grid = (_cdiv(BH, TB), _cdiv(S, TS))

    # Weights: native dtype for the MXU when I/O is bf16 (2x MXU throughput,
    # f32 accumulation via preferred_element_type); f32 otherwise.
    if use_mxu and dtype == jnp.bfloat16:
        w_arg = w.astype(jnp.bfloat16)
    else:
        w_arg = w.astype(jnp.float32)
    b_arg = b.astype(jnp.float32).reshape(C, 1)

    kernel = _make_mxu_kernel(TB) if use_mxu else _channel_mix_vpu_kernel

    # VMEM budget: double-buffered in + out tiles + resident weights + headroom,
    # capped at 64 MiB so it is safe on v7x's smaller VMEM.
    c_pad = _round_up(C, 8)
    tile_bytes = TB * c_pad * _round_up(TS, 128) * itemsize
    w_bytes = c_pad * _round_up(C, 128) * 4
    needed = 4 * tile_bytes + 2 * (w_bytes + c_pad * 128 * 4) + (2 << 20)
    vmem_limit = int(min(max(needed, 16 << 20), 64 << 20))

    out = pl.pallas_call(
        kernel,
        out_shape=jax.ShapeDtypeStruct((BH, C, S), dtype),
        grid_spec=pltpu.PrefetchScalarGridSpec(
            num_scalar_prefetch=0,
            grid=grid,
            in_specs=[
                pl.BlockSpec((C, C), lambda i, j: (0, 0)),     # weights (resident)
                pl.BlockSpec((C, 1), lambda i, j: (0, 0)),     # bias (resident)
                pl.BlockSpec((TB, C, TS), lambda i, j: (i, 0, j)),
            ],
            out_specs=pl.BlockSpec((TB, C, TS), lambda i, j: (i, 0, j)),
        ),
        compiler_params=pltpu.CompilerParams(
            dimension_semantics=("parallel", "parallel"),
            vmem_limit_bytes=vmem_limit,
        ),
    )(w_arg, b_arg, x_flat)

    if S != S_out:
        out = out[:, :, :S_out]
    return out


# ----------------------------------------------------------------------------
# Synthetic inner module + Wrapper (forward semantics of the PyTorch spec)
# ----------------------------------------------------------------------------
class InnerChannelMix:
    """Synthetic inner module: 1x1 conv over the channel axis of (B,H,C,X,Y)."""

    def __init__(self, channels: int, key):
        kw, kb = jax.random.split(key)
        self.weight = jax.random.normal(kw, (channels, channels), jnp.float32) * 0.1
        self.bias = jax.random.normal(kb, (channels,), jnp.float32) * 0.1

    def __call__(self, x):
        # (B, H, C, X, Y) -> contiguous (free) reshape to (BH, C, X*Y)
        B, H, C, X, Y = x.shape
        x_flat = x.reshape(B * H, C, X * Y)
        y_flat = channel_mix_pallas(x_flat, self.weight, self.bias)
        return y_flat.reshape(B, H, C, X, Y)


class Wrapper:
    """Makes sure the parameter names are the same as the checkpoint."""

    def __init__(self, module):
        self.module = module

    def forward(self, *args, **kwargs):
        """x: (batch, history, channel, x, y)"""
        return self.module(*args, **kwargs)

    __call__ = forward


if __name__ == "__main__":
    key = jax.random.PRNGKey(0)
    k_x1, k_m1, k_x2, k_m2 = jax.random.split(key, 4)

    # ---- small-C (VPU) path: x = (batch=2, history=1, channel=4, 16, 16) ----
    B, H, C, X, Y = 2, 1, 4, 16, 16
    x = jax.random.normal(k_x1, (B, H, C, X, Y), jnp.float32)
    model = Wrapper(InnerChannelMix(C, k_m1))
    out = jax.block_until_ready(model(x))
    ref = jnp.einsum("oc,bhcxy->bhoxy", model.module.weight, x,
                     precision=jax.lax.Precision.HIGHEST) \
        + model.module.bias.reshape(1, 1, C, 1, 1)
    assert out.shape == (B, H, C, X, Y)
    assert jnp.allclose(out, ref, atol=1e-5, rtol=1e-5)

    # ---- large-C (MXU) path: x = (batch=1, history=2, channel=32, 32, 64) ----
    B2, H2, C2, X2, Y2 = 1, 2, 32, 32, 64
    x2 = jax.random.normal(k_x2, (B2, H2, C2, X2, Y2), jnp.float32)
    model2 = Wrapper(InnerChannelMix(C2, k_m2))
    out2 = jax.block_until_ready(model2(x2))
    ref2 = jnp.einsum("oc,bhcxy->bhoxy", model2.module.weight, x2,
                      precision=jax.lax.Precision.HIGHEST) \
        + model2.module.bias.reshape(1, 1, C2, 1, 1)
    assert out2.shape == (B2, H2, C2, X2, Y2)
    # MXU may use bf16 passes at default precision; loose tolerance vs f32 ref.
    assert jnp.allclose(out2, ref2, atol=2e-2, rtol=2e-2)

    print("KERNEL_OK")
</pallas_src>

<mosaic_0001>
module attributes {stable_mosaic.version = 11 : i64} {
  func.func @_channel_mix_vpu_kernel(%arg0: i32, %arg1: i32, %arg2: memref<4x4xf32, #tpu.memory_space<vmem>>, %arg3: memref<4x1xf32, #tpu.memory_space<vmem>>, %arg4: memref<2x4x256xf32, #tpu.memory_space<vmem>>, %arg5: memref<2x4x256xf32, #tpu.memory_space<vmem>>) attributes {dimension_semantics = [#tpu.dimension_semantics<parallel>, #tpu.dimension_semantics<parallel>], iteration_bounds = array<i64: 1, 1>, scalar_prefetch = 0 : i64, scratch_operands = 0 : i64, tpu.core_type = #tpu.core_type<tc>, window_params = [{pipeline_mode = #tpu.pipeline_mode<synchronous>, transform_indices = @transform_0, window_bounds = array<i64: 4, 4>}, {pipeline_mode = #tpu.pipeline_mode<synchronous>, transform_indices = @transform_1, window_bounds = array<i64: 4, 1>}, {transform_indices = @transform_2, window_bounds = array<i64: 2, 4, 256>}, {transform_indices = @transform_3, window_bounds = array<i64: 2, 4, 256>}]} {
    %c0 = arith.constant 0 : index
    %c0_0 = arith.constant 0 : index
    %c0_1 = arith.constant 0 : index
    %0 = vector.load %arg4[%c0, %c0_0, %c0_1] : memref<2x4x256xf32, #tpu.memory_space<vmem>>, vector<2x4x256xf32>
    %c0_2 = arith.constant 0 : index
    %c0_3 = arith.constant 0 : index
    %1 = vector.load %arg2[%c0_2, %c0_3] : memref<4x4xf32, #tpu.memory_space<vmem>>, vector<4x4xf32>
    %2 = vector.extract_strided_slice %0 {offsets = [0, 0, 0], sizes = [2, 1, 256], strides = [1, 1, 1]} : vector<2x4x256xf32> to vector<2x1x256xf32>
    %3 = vector.extract_strided_slice %1 {offsets = [0, 0], sizes = [4, 1], strides = [1, 1]} : vector<4x4xf32> to vector<4x1xf32>
    %4 = vector.shape_cast %3 : vector<4x1xf32> to vector<1x4x1xf32>
    %5 = vector.broadcast %2 : vector<2x1x256xf32> to vector<2x4x256xf32>
    %6 = vector.broadcast %4 : vector<1x4x1xf32> to vector<2x4x256xf32>
    %7 = arith.mulf %5, %6 : vector<2x4x256xf32>
    %8 = vector.extract_strided_slice %0 {offsets = [0, 1, 0], sizes = [2, 1, 256], strides = [1, 1, 1]} : vector<2x4x256xf32> to vector<2x1x256xf32>
    %9 = vector.extract_strided_slice %1 {offsets = [0, 1], sizes = [4, 1], strides = [1, 1]} : vector<4x4xf32> to vector<4x1xf32>
    %10 = vector.shape_cast %9 : vector<4x1xf32> to vector<1x4x1xf32>
    %11 = vector.broadcast %8 : vector<2x1x256xf32> to vector<2x4x256xf32>
    %12 = vector.broadcast %10 : vector<1x4x1xf32> to vector<2x4x256xf32>
    %13 = arith.mulf %11, %12 : vector<2x4x256xf32>
    %14 = arith.addf %7, %13 : vector<2x4x256xf32>
    %15 = vector.extract_strided_slice %0 {offsets = [0, 2, 0], sizes = [2, 1, 256], strides = [1, 1, 1]} : vector<2x4x256xf32> to vector<2x1x256xf32>
    %16 = vector.extract_strided_slice %1 {offsets = [0, 2], sizes = [4, 1], strides = [1, 1]} : vector<4x4xf32> to vector<4x1xf32>
    %17 = vector.shape_cast %16 : vector<4x1xf32> to vector<1x4x1xf32>
    %18 = vector.broadcast %15 : vector<2x1x256xf32> to vector<2x4x256xf32>
    %19 = vector.broadcast %17 : vector<1x4x1xf32> to vector<2x4x256xf32>
    %20 = arith.mulf %18, %19 : vector<2x4x256xf32>
    %21 = arith.addf %14, %20 : vector<2x4x256xf32>
    %22 = vector.extract_strided_slice %0 {offsets = [0, 3, 0], sizes = [2, 1, 256], strides = [1, 1, 1]} : vector<2x4x256xf32> to vector<2x1x256xf32>
    %23 = vector.extract_strided_slice %1 {offsets = [0, 3], sizes = [4, 1], strides = [1, 1]} : vector<4x4xf32> to vector<4x1xf32>
    %24 = vector.shape_cast %23 : vector<4x1xf32> to vector<1x4x1xf32>
    %25 = vector.broadcast %22 : vector<2x1x256xf32> to vector<2x4x256xf32>
    %26 = vector.broadcast %24 : vector<1x4x1xf32> to vector<2x4x256xf32>
    %27 = arith.mulf %25, %26 : vector<2x4x256xf32>
    %28 = arith.addf %21, %27 : vector<2x4x256xf32>
    %c0_4 = arith.constant 0 : index
    %c0_5 = arith.constant 0 : index
    %29 = vector.load %arg3[%c0_4, %c0_5] : memref<4x1xf32, #tpu.memory_space<vmem>>, vector<4x1xf32>
    %30 = vector.shape_cast %29 : vector<4x1xf32> to vector<1x4x1xf32>
    %31 = vector.broadcast %30 : vector<1x4x1xf32> to vector<2x4x256xf32>
    %32 = arith.addf %28, %31 : vector<2x4x256xf32>
    %c0_6 = arith.constant 0 : index
    %c0_7 = arith.constant 0 : index
    %c0_8 = arith.constant 0 : index
    %33 = vector.load %arg5[%c0_6, %c0_7, %c0_8] : memref<2x4x256xf32, #tpu.memory_space<vmem>>, vector<2x4x256xf32>
    tpu.vector_store %arg5[%c0_6, %c0_7, %c0_8], %32 {strides = array<i32>} : memref<2x4x256xf32, #tpu.memory_space<vmem>>, vector<2x4x256xf32>,
    return
  }
  func.func @transform_0(%arg0: i32, %arg1: i32) -> (i32, i32) {
    %c0_i32 = arith.constant 0 : i32
    %c0_i32_0 = arith.constant 0 : i32
    %c0_i32_1 = arith.constant 0 : i32
    return %c0_i32, %c0_i32_0 : i32, i32
  }
  func.func @transform_1(%arg0: i32, %arg1: i32) -> (i32, i32) {
    %c0_i32 = arith.constant 0 : i32
    %c0_i32_0 = arith.constant 0 : i32
    %c0_i32_1 = arith.constant 0 : i32
    return %c0_i32, %c0_i32_0 : i32, i32
  }
  func.func @transform_2(%arg0: i32, %arg1: i32) -> (i32, i32, i32) {
    %c0_i32 = arith.constant 0 : i32
    %c0_i32_0 = arith.constant 0 : i32
    return %arg0, %c0_i32, %arg1 : i32, i32, i32
  }
  func.func @transform_3(%arg0: i32, %arg1: i32) -> (i32, i32, i32) {
    %c0_i32 = arith.constant 0 : i32
    %c0_i32_0 = arith.constant 0 : i32
    return %arg0, %c0_i32, %arg1 : i32, i32, i32
  }
}

</mosaic_0001>

<llo_original>
// kernel: tpu_custom_call.1
$region0: #{tpu_custom_call.1}
  #allocation0 [shape = 'u32[]', space=smem, size = 0x4, offset = 0x4, fixed_abs, tag = 'smem constant byte address 0x4 - core index']
  #allocation1 [shape = 'u32[144,128]{1,0:T(1,128)}', space=vmem, size = 0x12000, scoped, tag = 'internal scratch']
  %s0 = inlined_call_operand.vmem [shape: f32[4,4], index: 0, kind: input, shape index: {}]
  %s1 = inlined_call_operand.vmem [shape: f32[4,1], index: 1, kind: input, shape index: {}]
  %s2 = inlined_call_operand.hbm [shape: f32[2,4,256], index: 2, kind: input, shape index: {}]
  %s3 = inlined_call_operand.hbm [shape: f32[2,4,256], index: 3, kind: output, shape index: {}]
  %s4 = sld [smem:[#allocation0]]
  $region26: #{tpu_custom_call.1} parent=0
    _
  %s6 = ssub.s32 1, %s4
  %s7 = scalar_select 0, %s6, %s4
  $region1: #{tpu_custom_call.1} parent=0
    #allocation2 [shape = 'u8[8192]{0}', space=vmem, size = 0x2000, scoped, tag = 'input window, operand 2, single buffered']
    #allocation3 [shape = 's32[1]{0}', space=sflag, size = 0x4, scoped, tag = 'scoped memory for tpu_custom_call.1']
    #allocation4 [shape = 's32[1]{0}', space=sflag, size = 0x4, scoped, tag = 'scoped memory for tpu_custom_call.1']
    #allocation5 [shape = 'u8[8192]{0}', space=vmem, size = 0x2000, scoped, tag = 'output window, operand 0, single buffered']
    %8 = vsyncpa [#allocation3], 0
    %9 = vsyncpa [#allocation4], 0
    // Predicated region
    $region2: #{tpu_custom_call.1} parent=1 // pred_check
      _
    $region3: #{tpu_custom_call.1} parent=1 // pred_check_branch
      %11 = sbr.rel (0) target = $region5
    $region4: #{tpu_custom_call.1} parent=1 // pred_region
      _
    $region5: #{tpu_custom_call.1} parent=1 // pred_fallthru
      _
    // Predicated region
    $region6: #{tpu_custom_call.1} parent=1 // pred_check
      _
    $region7: #{tpu_custom_call.1} parent=1 // pred_check_branch
      %13 = sbr.rel (0) target = $region9
    $region8: #{tpu_custom_call.1} parent=1 // pred_region
      _
    $region9: #{tpu_custom_call.1} parent=1 // pred_fallthru
      _
    // Predicated region
    $region10: #{tpu_custom_call.1} parent=1 // pred_check
      _
    $region11: #{tpu_custom_call.1} parent=1 // pred_check_branch
      %15 = sbr.rel (0) target = $region13
    $region12: #{tpu_custom_call.1} parent=1 // pred_region
      %s17 = ssub.s32 256, 256
      %18 = vsyncadd [#allocation3], %s17
      %s19 = sshll.u32 [#allocation2], 4
      %s20 = int_to_ptr.vmem [resolvable:$true] %s19
      %25 = dma.hbm_to_vmem [thread:$0]  %s2, 256, %s20, [#allocation3], 128, 128, 8
    $region13: #{tpu_custom_call.1} parent=1 // pred_fallthru
      _
    // Predicated region
    $region14: #{tpu_custom_call.1} parent=1 // pred_check
      _
    $region15: #{tpu_custom_call.1} parent=1 // pred_check_branch
      %27 = sbr.rel (0) target = $region17
    $region16: #{tpu_custom_call.1} parent=1 // pred_region
      %28 = dma.done [#allocation3], 256
    $region17: #{tpu_custom_call.1} parent=1 // pred_fallthru
      _
    %v29 = vld [vmem:[#allocation2] sm:$0xff]
    %v30 = vld [vmem:[#allocation2 + $0x8] sm:$0xff]
    %v31 = vld [vmem:[%s0] sm:$0xf]
    %v34 = vlaneseq
    %v35 = vshrl.u32 %v34, 7
    %v36 = vsub.s32 0, %v35
    %v37 = vrot.slane %v29, %v36
    %v38 = vlaneseq
    %v39 = vshrl.u32 %v38, 7
    %v40 = vsub.s32 4, %v39
    %v41 = vrot.slane %v29, %v40
    %v42 = vlaneseq
    %v43 = vshrl.u32 %v42, 7
    %v44 = vsub.s32 0, %v43
    %v45 = vrot.slane %v30, %v44
    %v46 = vlaneseq
    %v47 = vshrl.u32 %v46, 7
    %v48 = vsub.s32 4, %v47
    %v49 = vrot.slane %v30, %v48
    %v54 = vlaneseq
    %v55 = vshrl.u32 %v54, 7
    %v56 = vsub.s32 0, %v55
    %v57 = vrot.slane %v37, %v56
    %v58 = vlaneseq
    %v59 = vshrl.u32 %v58, 7
    %v60 = vsub.s32 0, %v59
    %v61 = vrot.slane %v41, %v60
    %v62 = vlaneseq
    %v63 = vshrl.u32 %v62, 7
    %v64 = vsub.s32 0, %v63
    %v65 = vrot.slane %v45, %v64
    %v66 = vlaneseq
    %v67 = vshrl.u32 %v66, 7
    %v68 = vsub.s32 0, %v67
    %v69 = vrot.slane %v49, %v68
    %71 = vset.pattern.permute.xlu0 0
    %72 = vperm.xlu0 %71, %v31
    %v73 = vpop.permute.xlu0 %72
    %v75 = vmul.f32 %v57, %v73
    %v76 = vmul.f32 %v61, %v73
    %v77 = vmul.f32 %v65, %v73
    %v78 = vmul.f32 %v69, %v73
    %v79 = vlaneseq
    %v80 = vshrl.u32 %v79, 7
    %v81 = vsub.s32 1, %v80
    %v82 = vrot.slane %v29, %v81
    %v83 = vlaneseq
    %v84 = vshrl.u32 %v83, 7
    %v85 = vsub.s32 5, %v84
    %v86 = vrot.slane %v29, %v85
    %v87 = vlaneseq
    %v88 = vshrl.u32 %v87, 7
    %v89 = vsub.s32 1, %v88
    %v90 = vrot.slane %v30, %v89
    %v91 = vlaneseq
    %v92 = vshrl.u32 %v91, 7
    %v93 = vsub.s32 5, %v92
    %v94 = vrot.slane %v30, %v93
    %v99 = vlaneseq
    %v100 = vshrl.u32 %v99, 7
    %v101 = vsub.s32 1, %v100
    %v102 = vrot.slane %v82, %v101
    %v103 = vlaneseq
    %v104 = vshrl.u32 %v103, 7
    %v105 = vsub.s32 1, %v104
    %v106 = vrot.slane %v86, %v105
    %v107 = vlaneseq
    %v108 = vshrl.u32 %v107, 7
    %v109 = vsub.s32 1, %v108
    %v110 = vrot.slane %v90, %v109
    %v111 = vlaneseq
    %v112 = vshrl.u32 %v111, 7
    %v113 = vsub.s32 1, %v112
    %v114 = vrot.slane %v94, %v113
    %115 = vset.pattern.permute.xlu0 1
    %116 = vperm.xlu0 %115, %v31
    %v117 = vpop.permute.xlu0 %116
    %v119 = vmul.f32 %v102, %v117
    %v120 = vmul.f32 %v106, %v117
    %v121 = vmul.f32 %v110, %v117
    %v122 = vmul.f32 %v114, %v117
    %v123 = vadd.f32 %v75, %v119
    %v124 = vadd.f32 %v76, %v120
    %v125 = vadd.f32 %v77, %v121
    %v126 = vadd.f32 %v78, %v122
    %v127 = vlaneseq
    %v128 = vshrl.u32 %v127, 7
    %v129 = vsub.s32 2, %v128
    %v130 = vrot.slane %v29, %v129
    %v131 = vlaneseq
    %v132 = vshrl.u32 %v131, 7
    %v133 = vsub.s32 6, %v132
    %v134 = vrot.slane %v29, %v133
    %v135 = vlaneseq
    %v136 = vshrl.u32 %v135, 7
    %v137 = vsub.s32 2, %v136
    %v138 = vrot.slane %v30, %v137
    %v139 = vlaneseq
    %v140 = vshrl.u32 %v139, 7
    %v141 = vsub.s32 6, %v140
    %v142 = vrot.slane %v30, %v141
    %v147 = vlaneseq
    %v148 = vshrl.u32 %v147, 7
    %v149 = vsub.s32 2, %v148
    %v150 = vrot.slane %v130, %v149
    %v151 = vlaneseq
    %v152 = vshrl.u32 %v151, 7
    %v153 = vsub.s32 2, %v152
    %v154 = vrot.slane %v134, %v153
    %v155 = vlaneseq
    %v156 = vshrl.u32 %v155, 7
    %v157 = vsub.s32 2, %v156
    %v158 = vrot.slane %v138, %v157
    %v159 = vlaneseq
    %v160 = vshrl.u32 %v159, 7
    %v161 = vsub.s32 2, %v160
    %v162 = vrot.slane %v142, %v161
    %163 = vset.pattern.permute.xlu0 2
    %164 = vperm.xlu0 %163, %v31
    %v165 = vpop.permute.xlu0 %164
    %v167 = vmul.f32 %v150, %v165
    %v168 = vmul.f32 %v154, %v165
    %v169 = vmul.f32 %v158, %v165
    %v170 = vmul.f32 %v162, %v165
    %v171 = vadd.f32 %v123, %v167
    %v172 = vadd.f32 %v124, %v168
    %v173 = vadd.f32 %v125, %v169
    %v174 = vadd.f32 %v126, %v170
    %v175 = vlaneseq
    %v176 = vshrl.u32 %v175, 7
    %v177 = vsub.s32 3, %v176
    %v178 = vrot.slane %v29, %v177
    %v179 = vlaneseq
    %v180 = vshrl.u32 %v179, 7
    %v181 = vsub.s32 7, %v180
    %v182 = vrot.slane %v29, %v181
    %v183 = vlaneseq
    %v184 = vshrl.u32 %v183, 7
    %v185 = vsub.s32 3, %v184
    %v186 = vrot.slane %v30, %v185
    %v187 = vlaneseq
    %v188 = vshrl.u32 %v187, 7
    %v189 = vsub.s32 7, %v188
    %v190 = vrot.slane %v30, %v189
    %v195 = vlaneseq
    %v196 = vshrl.u32 %v195, 7
    %v197 = vsub.s32 3, %v196
    %v198 = vrot.slane %v178, %v197
    %v199 = vlaneseq
    %v200 = vshrl.u32 %v199, 7
    %v201 = vsub.s32 3, %v200
    %v202 = vrot.slane %v182, %v201
    %v203 = vlaneseq
    %v204 = vshrl.u32 %v203, 7
    %v205 = vsub.s32 3, %v204
    %v206 = vrot.slane %v186, %v205
    %v207 = vlaneseq
    %v208 = vshrl.u32 %v207, 7
    %v209 = vsub.s32 3, %v208
    %v210 = vrot.slane %v190, %v209
    %211 = vset.pattern.permute.xlu0 3
    %212 = vperm.xlu0 %211, %v31
    %v213 = vpop.permute.xlu0 %212
    %v215 = vmul.f32 %v198, %v213
    %v216 = vmul.f32 %v202, %v213
    %v217 = vmul.f32 %v206, %v213
    %v218 = vmul.f32 %v210, %v213
    %v219 = vadd.f32 %v171, %v215
    %v220 = vadd.f32 %v172, %v216
    %v221 = vadd.f32 %v173, %v217
    %v222 = vadd.f32 %v174, %v218
    %v223 = vld [vmem:[%s1] sm:$0xf]
    %225 = vset.pattern.permute.xlu0 0
    %226 = vperm.xlu0 %225, %v223
    %v227 = vpop.permute.xlu0 %226
    %v229 = vadd.f32 %v219, %v227
    %v230 = vadd.f32 %v220, %v227
    %v231 = vadd.f32 %v221, %v227
    %v232 = vadd.f32 %v222, %v227
    %v237 = vcombine.low %v229, %v230
    %v238 = vcombine.low %v231, %v232
    %241 = vst [vmem:[#allocation5] sm:$0xff] %v237
    %242 = vst [vmem:[#allocation5 + $0x8] sm:$0xff] %v238
    // Predicated region
    $region18: #{tpu_custom_call.1} parent=1 // pred_check
      _
    $region19: #{tpu_custom_call.1} parent=1 // pred_check_branch
      %244 = sbr.rel (0) target = $region21
    $region20: #{tpu_custom_call.1} parent=1 // pred_region
      %s246 = ssub.s32 256, 256
      %247 = vsyncadd [#allocation4], %s246
      %s248 = sshll.u32 [#allocation5], 4
      %s249 = int_to_ptr.vmem [resolvable:$true] %s248
      %254 = dma.vmem_to_hbm [thread:$0]  %s249, 256, %s3, [#allocation4], 128, 128, 8
    $region21: #{tpu_custom_call.1} parent=1 // pred_fallthru
      _
    // Predicated region
    $region22: #{tpu_custom_call.1} parent=1 // pred_check
      _
    $region23: #{tpu_custom_call.1} parent=1 // pred_check_branch
      %256 = sbr.rel (0) target = $region25
    $region24: #{tpu_custom_call.1} parent=1 // pred_region
      %257 = dma.done [#allocation4], 256
    $region25: #{tpu_custom_call.1} parent=1 // pred_fallthru
      _
    %258 = vsyncpa [#allocation3], 1
    %259 = vsyncpa [#allocation4], 1

</llo_original>
